<compile_context>
chip_gen: v6e
topology: v6e:2x2x1
jax: 0.10.0
libtpu: 0.0.40
codegen_flags: <defaults>
</compile_context>

<pallas_src>
import functools
import math

import jax
import jax.numpy as jnp
from jax import lax
from jax.experimental import pallas as pl
from jax.experimental.pallas import tpu as pltpu

_BN_EPS = 1e-5


# ----------------------------------------------------------------------------
# Helpers
# ----------------------------------------------------------------------------

def _full_spec(shape):
    """BlockSpec covering the whole array (used with grid=(1,))."""
    nd = len(shape)
    return pl.BlockSpec(tuple(shape), lambda i, _nd=nd: (0,) * _nd)


def _batchnorm_train(y):
    """BatchNorm1d, training mode, gamma=1 / beta=0: stats over all rows of the call."""
    mu = jnp.mean(y, axis=0, keepdims=True)
    var = jnp.mean((y - mu) ** 2, axis=0, keepdims=True)
    return (y - mu) * lax.rsqrt(var + _BN_EPS)


# ----------------------------------------------------------------------------
# Fused MLP kernel (keypoint encoder)
# ----------------------------------------------------------------------------

def _mlp_kernel(*refs, n_layers, do_bn, is_train, has_residual):
    # refs = x, [residual], w0, b0, ..., w_{L-1}, b_{L-1}, out
    x_ref = refs[0]
    widx = 2 if has_residual else 1
    o_ref = refs[-1]

    y = x_ref[...]
    for l in range(n_layers):
        w = refs[widx + 2 * l][...]
        b = refs[widx + 2 * l + 1][...]
        y = jnp.dot(y, w, preferred_element_type=jnp.float32) + b
        if l < n_layers - 1:
            if do_bn and is_train:
                y = _batchnorm_train(y)
            y = jnp.maximum(y, 0.0)
    if has_residual:
        y = y + refs[1][...]
    o_ref[...] = y


def mlp_fused(x, layers, residual=None, do_bn=True, is_train=True):
    """Fused [Conv1d (+BN+ReLU)] x L MLP on a (rows, Cin) activation, one block."""
    rows = x.shape[0]
    cout = layers[-1]['w'].shape[1]

    args = [x]
    if residual is not None:
        args.append(residual)
    for p in layers:
        args.append(p['w'])
        args.append(p['b'].reshape(1, -1))

    kernel = functools.partial(
        _mlp_kernel, n_layers=len(layers), do_bn=do_bn, is_train=is_train,
        has_residual=residual is not None)

    flops = 2 * rows * sum(p['w'].shape[0] * p['w'].shape[1] for p in layers)
    bytes_accessed = 4 * (sum(int(a.size) for a in args) + rows * cout)

    return pl.pallas_call(
        kernel,
        out_shape=jax.ShapeDtypeStruct((rows, cout), jnp.float32),
        grid=(1,),
        in_specs=[_full_spec(a.shape) for a in args],
        out_specs=_full_spec((rows, cout)),
        cost_estimate=pl.CostEstimate(flops=int(flops), transcendentals=0,
                                      bytes_accessed=int(bytes_accessed)),
        compiler_params=pltpu.CompilerParams(dimension_semantics=("arbitrary",)),
    )(*args)


# ----------------------------------------------------------------------------
# Fused final projection (both images, one call, no HBM concat)
# ----------------------------------------------------------------------------

def _final_proj_kernel(x0_ref, x1_ref, w_ref, b_ref, o0_ref, o1_ref):
    w = w_ref[...]
    b = b_ref[...]
    o0_ref[...] = jnp.dot(x0_ref[...], w, preferred_element_type=jnp.float32) + b
    o1_ref[...] = jnp.dot(x1_ref[...], w, preferred_element_type=jnp.float32) + b


def final_proj_fused(x0, x1, p):
    r0, d_in = x0.shape
    r1 = x1.shape[0]
    cout = p['w'].shape[1]
    args = [x0, x1, p['w'], p['b'].reshape(1, -1)]

    flops = 2 * (r0 + r1) * d_in * cout
    bytes_accessed = 4 * (sum(int(a.size) for a in args) + (r0 + r1) * cout)

    return pl.pallas_call(
        _final_proj_kernel,
        out_shape=(jax.ShapeDtypeStruct((r0, cout), jnp.float32),
                   jax.ShapeDtypeStruct((r1, cout), jnp.float32)),
        grid=(1,),
        in_specs=[_full_spec(a.shape) for a in args],
        out_specs=(_full_spec((r0, cout)), _full_spec((r1, cout))),
        cost_estimate=pl.CostEstimate(flops=int(flops), transcendentals=0,
                                      bytes_accessed=int(bytes_accessed)),
        compiler_params=pltpu.CompilerParams(dimension_semantics=("arbitrary",)),
    )(*args)


# ----------------------------------------------------------------------------
# Fused attentional-GNN layer kernel (both images, MHA + merge + MLP + residual)
# ----------------------------------------------------------------------------

def _gnn_layer_kernel(x0_ref, x1_ref,
                      wq_ref, bq_ref, wk_ref, bk_ref, wv_ref, bv_ref,
                      wm_ref, bm_ref, w1_ref, b1_ref, w2_ref, b2_ref,
                      o0_ref, o1_ref,
                      *, batch, n0, n1, num_heads, cross, do_bn, is_train):
    D = wq_ref.shape[0]
    Dh = D // num_heads
    scale = 1.0 / math.sqrt(Dh)

    x0 = x0_ref[...]
    x1 = x1_ref[...]
    wq = wq_ref[...]; bq = bq_ref[...]
    wk = wk_ref[...]; bk = bk_ref[...]
    wv = wv_ref[...]; bv = bv_ref[...]
    wm = wm_ref[...]; bm = bm_ref[...]
    w1 = w1_ref[...]; b1 = b1_ref[...]
    w2 = w2_ref[...]; b2 = b2_ref[...]
    # concat([x, message]) @ W1 == x @ W1[:D] + message @ W1[D:]  (no in-kernel concat)
    w1_top = w1[0:D, :]
    w1_bot = w1[D:2 * D, :]

    if cross:
        pairs = ((x0, x1, n0, n1), (x1, x0, n1, n0))
    else:
        pairs = ((x0, x0, n0, n0), (x1, x1, n1, n1))

    outs = []
    for x, src, nx, ns in pairs:
        rows_x = batch * nx
        rows_s = batch * ns

        # q from x; k, v from the source descriptors (self- or cross-attention).
        # 1/sqrt(Dh) folded once into q (instead of per-head score multiplies).
        q = (jnp.dot(x, wq, preferred_element_type=jnp.float32) + bq) * scale
        k = jnp.dot(src, wk, preferred_element_type=jnp.float32) + bk
        v = jnp.dot(src, wv, preferred_element_type=jnp.float32) + bv

        # Batch-block bias: row i of x may only attend to row j of src belonging to
        # the same batch element.  Built once per pair; lets every head run as ONE
        # (rows_x, rows_s) matmul + softmax covering all batch elements.
        ri = lax.broadcasted_iota(jnp.int32, (rows_x, rows_s), 0)
        cj = lax.broadcasted_iota(jnp.int32, (rows_x, rows_s), 1)
        same = (ri < 0)  # all-False bool of the right shape
        for b in range(batch):
            rb = (ri >= b * nx) & (ri < (b + 1) * nx)
            cb = (cj >= b * ns) & (cj < (b + 1) * ns)
            same = same | (rb & cb)
        bias = jnp.where(same, 0.0, -1e30).astype(jnp.float32)

        # Multi-head attention with the merge projection fused per head:
        #   concat_h(oh) @ Wm == sum_h oh @ Wm[h*Dh:(h+1)*Dh]
        # so head outputs never leave registers (no VMEM scratch, no lane concat).
        msg = jnp.zeros((rows_x, D), jnp.float32)
        for h in range(num_heads):
            c0 = h * Dh
            qh = q[:, c0:c0 + Dh]
            kh = k[:, c0:c0 + Dh]
            vh = v[:, c0:c0 + Dh]
            # q @ k^T without materializing the transpose (trans_b semantics).
            s = lax.dot_general(qh, kh, (((1,), (1,)), ((), ())),
                                preferred_element_type=jnp.float32) + bias
            mx = jnp.max(s, axis=-1, keepdims=True)
            p = jnp.exp(s - mx)
            denom = jnp.sum(p, axis=-1, keepdims=True)
            p = p * pl.reciprocal(denom, approx=True)   # EUP slot, not VALU divide
            oh = jnp.dot(p, vh, preferred_element_type=jnp.float32)
            msg = msg + jnp.dot(oh, wm[c0:c0 + Dh, :],
                                preferred_element_type=jnp.float32)
        message = msg + bm

        y = (jnp.dot(x, w1_top, preferred_element_type=jnp.float32)
             + jnp.dot(message, w1_bot, preferred_element_type=jnp.float32) + b1)
        if do_bn and is_train:
            y = _batchnorm_train(y)
        y = jnp.maximum(y, 0.0)
        delta = jnp.dot(y, w2, preferred_element_type=jnp.float32) + b2
        outs.append(x + delta)

    o0_ref[...] = outs[0]
    o1_ref[...] = outs[1]


def gnn_layer(x0, x1, p, num_heads, batch, cross, is_train=True):
    r0, D = x0.shape
    r1 = x1.shape[0]
    n0 = r0 // batch
    n1 = r1 // batch
    dh = D // num_heads
    a = p['attn']

    args = [x0, x1,
            a['q']['w'], a['q']['b'].reshape(1, -1),
            a['k']['w'], a['k']['b'].reshape(1, -1),
            a['v']['w'], a['v']['b'].reshape(1, -1),
            a['merge']['w'], a['merge']['b'].reshape(1, -1),
            p['mlp'][0]['w'], p['mlp'][0]['b'].reshape(1, -1),
            p['mlp'][1]['w'], p['mlp'][1]['b'].reshape(1, -1)]

    kernel = functools.partial(
        _gnn_layer_kernel, batch=batch, n0=n0, n1=n1, num_heads=num_heads,
        cross=cross, do_bn=True, is_train=is_train)

    def branch_cost(nx, ns):
        rows_x, rows_s = batch * nx, batch * ns
        proj = 2 * (rows_x * D * D + 2 * rows_s * D * D)
        attn = 2 * num_heads * (2 * rows_x * rows_s * dh + rows_x * dh * D)
        mlp = 2 * rows_x * (2 * D) * (2 * D) + 2 * rows_x * (2 * D) * D
        return proj + attn + mlp

    ns0 = n1 if cross else n0
    ns1 = n0 if cross else n1
    flops = branch_cost(n0, ns0) + branch_cost(n1, ns1)
    trans = num_heads * batch * batch * (n0 * ns0 + n1 * ns1)
    bytes_accessed = 4 * (sum(int(v.size) for v in args) + (r0 + r1) * D)

    return pl.pallas_call(
        kernel,
        out_shape=(jax.ShapeDtypeStruct((r0, D), jnp.float32),
                   jax.ShapeDtypeStruct((r1, D), jnp.float32)),
        grid=(1,),
        in_specs=[_full_spec(v.shape) for v in args],
        out_specs=(_full_spec((r0, D)), _full_spec((r1, D))),
        cost_estimate=pl.CostEstimate(flops=int(flops), transcendentals=int(trans),
                                      bytes_accessed=int(bytes_accessed)),
        compiler_params=pltpu.CompilerParams(dimension_semantics=("arbitrary",)),
    )(*args)


# ----------------------------------------------------------------------------
# Fused score matrix + dustbin coupling + log-Sinkhorn optimal transport
# ----------------------------------------------------------------------------

def _score_ot_kernel(d0_ref, d1_ref, alpha_ref, o_ref, *, iters, dim, m, n):
    d0 = d0_ref[0]                      # (m+1, D), row m is zero padding
    d1 = d1_ref[0]                      # (n+1, D), row n is zero padding
    alpha = alpha_ref[0]                # SMEM scalar (bin_score)

    # Score matrix at the padded size: d0 @ d1^T / sqrt(D) (no transpose
    # materialized).  The padded row/col are overwritten by alpha below.
    s = lax.dot_general(d0, d1, (((1,), (1,)), ((), ())),
                        preferred_element_type=jnp.float32) * (1.0 / math.sqrt(dim))

    # Dustbin-augmented coupling, built entirely in registers (no partial stores,
    # no read-back of the output block).
    row = lax.broadcasted_iota(jnp.int32, (m + 1, n + 1), 0)
    col = lax.broadcasted_iota(jnp.int32, (m + 1, n + 1), 1)
    Z = jnp.where((row < m) & (col < n), s, alpha)

    norm = -math.log(m + n)
    rvec = lax.broadcasted_iota(jnp.int32, (m + 1, 1), 0)
    cvec = lax.broadcasted_iota(jnp.int32, (1, n + 1), 1)
    log_mu = jnp.where(rvec < m, norm, math.log(n) + norm).astype(jnp.float32)
    log_nu = jnp.where(cvec < n, norm, math.log(m) + norm).astype(jnp.float32)

    def lse_rows(x):    # logsumexp over lanes, (R, C) -> (R, 1)
        mx = jnp.max(x, axis=-1, keepdims=True)
        return mx + jnp.log(jnp.sum(jnp.exp(x - mx), axis=-1, keepdims=True))

    def lse_cols(x):    # logsumexp over sublanes, (R, C) -> (1, C)
        mx = jnp.max(x, axis=0, keepdims=True)
        return mx + jnp.log(jnp.sum(jnp.exp(x - mx), axis=0, keepdims=True))

    u = jnp.zeros((m + 1, 1), jnp.float32)
    v = jnp.zeros((1, n + 1), jnp.float32)
    for _ in range(iters):              # static trip count -> unrolled
        u = log_mu - lse_rows(Z + v)
        v = log_nu - lse_cols(Z + u)
        # TODO(synk): at realistic N, hoist a transposed Z (second matmul on the
        #             padded descriptors) so this column logsumexp becomes a
        #             lane-axis reduction; negligible at 17x17.
    o_ref[0] = Z + u + v - norm          # single full-block store


def score_ot(mdesc0, mdesc1, alpha, iters, dim):
    B, n0, D = mdesc0.shape
    n1 = mdesc1.shape[1]
    # Zero-pad one row per image so the in-kernel score matmul directly produces
    # the (m+1, n+1) dustbin-augmented shape (no in-kernel concat / partial store).
    d0p = jnp.pad(mdesc0, ((0, 0), (0, 1), (0, 0)))
    d1p = jnp.pad(mdesc1, ((0, 0), (0, 1), (0, 0)))
    alpha1 = jnp.reshape(alpha, (1,)).astype(jnp.float32)

    kernel = functools.partial(_score_ot_kernel, iters=iters, dim=dim, m=n0, n=n1)

    flops = B * (2 * (n0 + 1) * (n1 + 1) * D + iters * 8 * (n0 + 1) * (n1 + 1))
    trans = B * (iters * 2 + 1) * (n0 + 1) * (n1 + 1)
    bytes_accessed = 4 * (B * (n0 + n1 + 2) * D + 1 + B * (n0 + 1) * (n1 + 1))

    return pl.pallas_call(
        kernel,
        out_shape=jax.ShapeDtypeStruct((B, n0 + 1, n1 + 1), jnp.float32),
        grid=(B,),
        in_specs=[
            pl.BlockSpec((1, n0 + 1, D), lambda b: (b, 0, 0)),
            pl.BlockSpec((1, n1 + 1, D), lambda b: (b, 0, 0)),
            pl.BlockSpec(memory_space=pltpu.MemorySpace.SMEM),
        ],
        out_specs=pl.BlockSpec((1, n0 + 1, n1 + 1), lambda b: (b, 0, 0)),
        cost_estimate=pl.CostEstimate(flops=int(flops), transcendentals=int(trans),
                                      bytes_accessed=int(bytes_accessed)),
        compiler_params=pltpu.CompilerParams(dimension_semantics=("parallel",)),
    )(d0p, d1p, alpha1)


# ----------------------------------------------------------------------------
# SuperGlue forward (glue in plain JAX, all hot paths in the fused kernels)
# ----------------------------------------------------------------------------

def normalize_keypoints(kpts, image_shape):
    _, _, h, w = image_shape  # NCHW
    size = jnp.array([w, h], jnp.float32)
    center = size / 2.0
    scaling = jnp.max(size) * 0.7
    return (kpts - center[None, None, :]) / scaling


def superglue_forward(params, data, cfg, is_train=True):
    D = cfg['descriptor_dim']
    H = cfg['num_heads']
    B, _, n0 = data['descriptors0'].shape
    n1 = data['descriptors1'].shape[2]

    desc0 = jnp.transpose(data['descriptors0'], (0, 2, 1)).reshape(B * n0, D)
    desc1 = jnp.transpose(data['descriptors1'], (0, 2, 1)).reshape(B * n1, D)

    kpts0 = normalize_keypoints(data['keypoints0'], data['image0'].shape)
    kpts1 = normalize_keypoints(data['keypoints1'], data['image1'].shape)

    inp0 = jnp.concatenate([kpts0, data['scores0'][..., None]], -1).reshape(B * n0, 3)
    inp1 = jnp.concatenate([kpts1, data['scores1'][..., None]], -1).reshape(B * n1, 3)

    # Keypoint-encoder MLP fused with the visual-descriptor residual add.  Images
    # stay in separate calls so BatchNorm batch statistics match the reference
    # (one BN forward per image).
    desc0 = mlp_fused(inp0, params['kenc'], residual=desc0, do_bn=True, is_train=is_train)
    desc1 = mlp_fused(inp1, params['kenc'], residual=desc1, do_bn=True, is_train=is_train)

    # Attentional GNN: one fused pallas_call per layer for BOTH images.
    for p, name in zip(params['gnn'], cfg['gnn_layers']):
        desc0, desc1 = gnn_layer(desc0, desc1, p, H, B, cross=(name == 'cross'),
                                 is_train=is_train)

    # Final projection (no BN): both images in one call, no HBM concat.
    md0, md1 = final_proj_fused(desc0, desc1, params['final_proj'])
    mdesc0 = md0.reshape(B, n0, D)
    mdesc1 = md1.reshape(B, n1, D)

    # Fused score matrix + dustbins + log-Sinkhorn OT.
    Z = score_ot(mdesc0, mdesc1, params['bin_score'], cfg['sinkhorn_iterations'], D)

    # Mutual-NN match extraction (tiny argmax/gather work; stays in plain JAX).
    s = Z[:, :-1, :-1]
    N0, N1 = s.shape[1], s.shape[2]
    max0, indices0 = jnp.max(s, axis=2), jnp.argmax(s, axis=2)
    max1, indices1 = jnp.max(s, axis=1), jnp.argmax(s, axis=1)
    mutual0 = jnp.arange(N0)[None, :] == jnp.take_along_axis(indices1, indices0, axis=1)
    mutual1 = jnp.arange(N1)[None, :] == jnp.take_along_axis(indices0, indices1, axis=1)
    mscores0 = jnp.where(mutual0, jnp.exp(max0), 0.0)
    mscores1 = jnp.where(mutual1, jnp.take_along_axis(mscores0, indices1, axis=1), 0.0)
    valid0 = mutual0 & (mscores0 > cfg['match_threshold'])
    valid1 = mutual1 & jnp.take_along_axis(valid0, indices1, axis=1)
    matches0 = jnp.where(valid0, indices0, -1)
    matches1 = jnp.where(valid1, indices1, -1)

    return {
        'matches0': matches0,
        'matches1': matches1,
        'matching_scores0': mscores0,
        'matching_scores1': mscores1,
        'scores': Z,
    }


def matching_forward(params, data, cfg, is_train=True):
    """Matching.forward, 'sift' detector branch."""
    pred = {
        'keypoints0': data['keypoints0'], 'keypoints1': data['keypoints1'],
        'descriptors0': data['descriptors0'], 'descriptors1': data['descriptors1'],
    }
    data = {**data, **pred}
    # (the list/tuple -> stack branch is a no-op for array inputs)
    pred = {**pred, **superglue_forward(params, data, cfg, is_train=is_train)}
    return pred


# ----------------------------------------------------------------------------
# Deterministic parameter init
# ----------------------------------------------------------------------------

def init_linear(key, cin, cout, zero_bias=False, scale=0.1):
    kw, kb = jax.random.split(key)
    w = scale * jax.random.normal(kw, (cin, cout), jnp.float32)
    b = (jnp.zeros((cout,), jnp.float32) if zero_bias
         else scale * jax.random.normal(kb, (cout,), jnp.float32))
    return {'w': w, 'b': b}


def init_params(key, cfg):
    D = cfg['descriptor_dim']
    keys = iter(jax.random.split(key, 64))

    kenc_channels = [3] + list(cfg['keypoint_encoder']) + [D]
    kenc = [init_linear(next(keys), kenc_channels[i - 1], kenc_channels[i],
                        zero_bias=(i == len(kenc_channels) - 1))
            for i in range(1, len(kenc_channels))]

    gnn = []
    for _ in cfg['gnn_layers']:
        attn = {name: init_linear(next(keys), D, D)
                for name in ('q', 'k', 'v', 'merge')}
        mlp = [init_linear(next(keys), 2 * D, 2 * D),
               init_linear(next(keys), 2 * D, D, zero_bias=True)]
        gnn.append({'attn': attn, 'mlp': mlp})

    final_proj = init_linear(next(keys), D, D)
    return {'kenc': kenc, 'gnn': gnn, 'final_proj': final_proj,
            'bin_score': jnp.asarray(1.0, jnp.float32)}


# ----------------------------------------------------------------------------
# Main
# ----------------------------------------------------------------------------

if __name__ == "__main__":
    cfg = dict(
        detector='sift',
        descriptor_dim=32,
        keypoint_encoder=[16, 32],
        gnn_layers=['self', 'cross', 'self', 'cross'],
        num_heads=4,
        sinkhorn_iterations=10,
        match_threshold=0.2,
    )
    B, N, D, H, W = 2, 16, cfg['descriptor_dim'], 64, 64

    key = jax.random.PRNGKey(0)
    kp, k0, k1, k2, k3, k4, k5 = jax.random.split(key, 7)
    params = init_params(kp, cfg)

    data = {
        'image0': jnp.zeros((B, 1, H, W), jnp.float32),
        'image1': jnp.zeros((B, 1, H, W), jnp.float32),
        'keypoints0': jax.random.uniform(k0, (B, N, 2), jnp.float32, 0.0, W - 1.0),
        'keypoints1': jax.random.uniform(k1, (B, N, 2), jnp.float32, 0.0, W - 1.0),
        'scores0': jax.random.uniform(k2, (B, N), jnp.float32),
        'scores1': jax.random.uniform(k3, (B, N), jnp.float32),
        'descriptors0': jax.random.normal(k4, (B, D, N), jnp.float32),
        'descriptors1': jax.random.normal(k5, (B, D, N), jnp.float32),
    }

    pred = matching_forward(params, data, cfg, is_train=True)
    jax.tree_util.tree_map(jax.block_until_ready, pred)

    assert pred['matches0'].shape == (B, N)
    assert pred['matches1'].shape == (B, N)
    assert pred['matching_scores0'].shape == (B, N)
    assert pred['scores'].shape == (B, N + 1, N + 1)
    assert bool(jnp.all(jnp.isfinite(pred['scores'])))
    print("KERNEL_OK")
</pallas_src>

<mosaic_0001>
module attributes {stable_mosaic.version = 11 : i64} {
  func.func @_mlp_kernel(%arg0: i32, %arg1: memref<32x3xf32, #tpu.memory_space<vmem>>, %arg2: memref<32x32xf32, #tpu.memory_space<vmem>>, %arg3: memref<3x16xf32, #tpu.memory_space<vmem>>, %arg4: memref<1x16xf32, #tpu.memory_space<vmem>>, %arg5: memref<16x32xf32, #tpu.memory_space<vmem>>, %arg6: memref<1x32xf32, #tpu.memory_space<vmem>>, %arg7: memref<32x32xf32, #tpu.memory_space<vmem>>, %arg8: memref<1x32xf32, #tpu.memory_space<vmem>>, %arg9: memref<32x32xf32, #tpu.memory_space<vmem>>) attributes {dimension_semantics = [#tpu.dimension_semantics<arbitrary>], iteration_bounds = array<i64: 1>, scalar_prefetch = 0 : i64, scratch_operands = 0 : i64, tpu.core_type = #tpu.core_type<tc>, window_params = [{pipeline_mode = #tpu.pipeline_mode<synchronous>, transform_indices = @transform_0, window_bounds = array<i64: 32, 3>}, {pipeline_mode = #tpu.pipeline_mode<synchronous>, transform_indices = @transform_1, window_bounds = array<i64: 32, 32>}, {pipeline_mode = #tpu.pipeline_mode<synchronous>, transform_indices = @transform_2, window_bounds = array<i64: 3, 16>}, {pipeline_mode = #tpu.pipeline_mode<synchronous>, transform_indices = @transform_3, window_bounds = array<i64: 1, 16>}, {pipeline_mode = #tpu.pipeline_mode<synchronous>, transform_indices = @transform_4, window_bounds = array<i64: 16, 32>}, {pipeline_mode = #tpu.pipeline_mode<synchronous>, transform_indices = @transform_5, window_bounds = array<i64: 1, 32>}, {pipeline_mode = #tpu.pipeline_mode<synchronous>, transform_indices = @transform_6, window_bounds = array<i64: 32, 32>}, {pipeline_mode = #tpu.pipeline_mode<synchronous>, transform_indices = @transform_7, window_bounds = array<i64: 1, 32>}, {pipeline_mode = #tpu.pipeline_mode<synchronous>, transform_indices = @transform_8, window_bounds = array<i64: 32, 32>}]} {
    %c0 = arith.constant 0 : index
    %c0_0 = arith.constant 0 : index
    %0 = vector.load %arg1[%c0, %c0_0] : memref<32x3xf32, #tpu.memory_space<vmem>>, vector<32x3xf32>
    %c0_1 = arith.constant 0 : index
    %c0_2 = arith.constant 0 : index
    %1 = vector.load %arg3[%c0_1, %c0_2] : memref<3x16xf32, #tpu.memory_space<vmem>>, vector<3x16xf32>
    %c0_3 = arith.constant 0 : index
    %c0_4 = arith.constant 0 : index
    %2 = vector.load %arg4[%c0_3, %c0_4] : memref<1x16xf32, #tpu.memory_space<vmem>>, vector<1x16xf32>
    %cst = arith.constant dense<0.000000e+00> : vector<32x16xf32>
    %3 = tpu.matmul %0, %1, %cst {dimension_numbers = #tpu.dot_dimension_numbers<[1], [0], [0], [1], [0, 0, 1, 1], [], []>} : vector<32x3xf32>, vector<3x16xf32>, vector<32x16xf32> -> vector<32x16xf32>
    %4 = vector.broadcast %2 : vector<1x16xf32> to vector<32x16xf32>
    %5 = arith.addf %3, %4 : vector<32x16xf32>
    %cst_5 = arith.constant dense<0.000000e+00> : vector<16xf32>
    %6 = vector.multi_reduction <add>, %5, %cst_5 [0] : vector<32x16xf32> to vector<16xf32>
    %7 = vector.shape_cast %6 : vector<16xf32> to vector<1x16xf32>
    %cst_6 = arith.constant 3.200000e+01 : f32
    %8 = vector.broadcast %cst_6 : f32 to vector<1x16xf32>
    %9 = arith.divf %7, %8 : vector<1x16xf32>
    %10 = vector.broadcast %9 : vector<1x16xf32> to vector<32x16xf32>
    %11 = arith.subf %5, %10 : vector<32x16xf32>
    %12 = arith.mulf %11, %11 : vector<32x16xf32>
    %cst_7 = arith.constant dense<0.000000e+00> : vector<16xf32>
    %13 = vector.multi_reduction <add>, %12, %cst_7 [0] : vector<32x16xf32> to vector<16xf32>
    %14 = vector.shape_cast %13 : vector<16xf32> to vector<1x16xf32>
    %cst_8 = arith.constant 3.200000e+01 : f32
    %15 = vector.broadcast %cst_8 : f32 to vector<1x16xf32>
    %16 = arith.divf %14, %15 : vector<1x16xf32>
    %17 = vector.broadcast %9 : vector<1x16xf32> to vector<32x16xf32>
    %18 = arith.subf %5, %17 : vector<32x16xf32>
    %cst_9 = arith.constant 9.99999974E-6 : f32
    %19 = vector.broadcast %cst_9 : f32 to vector<1x16xf32>
    %20 = arith.addf %16, %19 : vector<1x16xf32>
    %21 = math.rsqrt %20 : vector<1x16xf32>
    %22 = vector.broadcast %21 : vector<1x16xf32> to vector<32x16xf32>
    %23 = arith.mulf %18, %22 : vector<32x16xf32>
    %cst_10 = arith.constant 0.000000e+00 : f32
    %24 = vector.broadcast %cst_10 : f32 to vector<32x16xf32>
    %25 = arith.maximumf %23, %24 : vector<32x16xf32>
    %c0_11 = arith.constant 0 : index
    %c0_12 = arith.constant 0 : index
    %26 = vector.load %arg5[%c0_11, %c0_12] : memref<16x32xf32, #tpu.memory_space<vmem>>, vector<16x32xf32>
    %c0_13 = arith.constant 0 : index
    %c0_14 = arith.constant 0 : index
    %27 = vector.load %arg6[%c0_13, %c0_14] : memref<1x32xf32, #tpu.memory_space<vmem>>, vector<1x32xf32>
    %cst_15 = arith.constant dense<0.000000e+00> : vector<32x32xf32>
    %28 = tpu.matmul %25, %26, %cst_15 {dimension_numbers = #tpu.dot_dimension_numbers<[1], [0], [0], [1], [0, 0, 1, 1], [], []>} : vector<32x16xf32>, vector<16x32xf32>, vector<32x32xf32> -> vector<32x32xf32>
    %29 = vector.broadcast %27 : vector<1x32xf32> to vector<32x32xf32>
    %30 = arith.addf %28, %29 : vector<32x32xf32>
    %cst_16 = arith.constant dense<0.000000e+00> : vector<32xf32>
    %31 = vector.multi_reduction <add>, %30, %cst_16 [0] : vector<32x32xf32> to vector<32xf32>
    %32 = vector.shape_cast %31 : vector<32xf32> to vector<1x32xf32>
    %cst_17 = arith.constant 3.200000e+01 : f32
    %33 = vector.broadcast %cst_17 : f32 to vector<1x32xf32>
    %34 = arith.divf %32, %33 : vector<1x32xf32>
    %35 = vector.broadcast %34 : vector<1x32xf32> to vector<32x32xf32>
    %36 = arith.subf %30, %35 : vector<32x32xf32>
    %37 = arith.mulf %36, %36 : vector<32x32xf32>
    %cst_18 = arith.constant dense<0.000000e+00> : vector<32xf32>
    %38 = vector.multi_reduction <add>, %37, %cst_18 [0] : vector<32x32xf32> to vector<32xf32>
    %39 = vector.shape_cast %38 : vector<32xf32> to vector<1x32xf32>
    %cst_19 = arith.constant 3.200000e+01 : f32
    %40 = vector.broadcast %cst_19 : f32 to vector<1x32xf32>
    %41 = arith.divf %39, %40 : vector<1x32xf32>
    %42 = vector.broadcast %34 : vector<1x32xf32> to vector<32x32xf32>
    %43 = arith.subf %30, %42 : vector<32x32xf32>
    %cst_20 = arith.constant 9.99999974E-6 : f32
    %44 = vector.broadcast %cst_20 : f32 to vector<1x32xf32>
    %45 = arith.addf %41, %44 : vector<1x32xf32>
    %46 = math.rsqrt %45 : vector<1x32xf32>
    %47 = vector.broadcast %46 : vector<1x32xf32> to vector<32x32xf32>
    %48 = arith.mulf %43, %47 : vector<32x32xf32>
    %cst_21 = arith.constant 0.000000e+00 : f32
    %49 = vector.broadcast %cst_21 : f32 to vector<32x32xf32>
    %50 = arith.maximumf %48, %49 : vector<32x32xf32>
    %c0_22 = arith.constant 0 : index
    %c0_23 = arith.constant 0 : index
    %51 = vector.load %arg7[%c0_22, %c0_23] : memref<32x32xf32, #tpu.memory_space<vmem>>, vector<32x32xf32>
    %c0_24 = arith.constant 0 : index
    %c0_25 = arith.constant 0 : index
    %52 = vector.load %arg8[%c0_24, %c0_25] : memref<1x32xf32, #tpu.memory_space<vmem>>, vector<1x32xf32>
    %cst_26 = arith.constant dense<0.000000e+00> : vector<32x32xf32>
    %53 = tpu.matmul %50, %51, %cst_26 {dimension_numbers = #tpu.dot_dimension_numbers<[1], [0], [0], [1], [0, 0, 1, 1], [], []>} : vector<32x32xf32>, vector<32x32xf32>, vector<32x32xf32> -> vector<32x32xf32>
    %54 = vector.broadcast %52 : vector<1x32xf32> to vector<32x32xf32>
    %55 = arith.addf %53, %54 : vector<32x32xf32>
    %c0_27 = arith.constant 0 : index
    %c0_28 = arith.constant 0 : index
    %56 = vector.load %arg2[%c0_27, %c0_28] : memref<32x32xf32, #tpu.memory_space<vmem>>, vector<32x32xf32>
    %57 = arith.addf %55, %56 : vector<32x32xf32>
    %c0_29 = arith.constant 0 : index
    %c0_30 = arith.constant 0 : index
    %58 = vector.load %arg9[%c0_29, %c0_30] : memref<32x32xf32, #tpu.memory_space<vmem>>, vector<32x32xf32>
    tpu.vector_store %arg9[%c0_29, %c0_30], %57 {strides = array<i32>} : memref<32x32xf32, #tpu.memory_space<vmem>>, vector<32x32xf32>,
    return
  }
  func.func @transform_0(%arg0: i32) -> (i32, i32) {
    %c0_i32 = arith.constant 0 : i32
    %c0_i32_0 = arith.constant 0 : i32
    %c0_i32_1 = arith.constant 0 : i32
    return %c0_i32, %c0_i32_0 : i32, i32
  }
  func.func @transform_1(%arg0: i32) -> (i32, i32) {
    %c0_i32 = arith.constant 0 : i32
    %c0_i32_0 = arith.constant 0 : i32
    %c0_i32_1 = arith.constant 0 : i32
    return %c0_i32, %c0_i32_0 : i32, i32
  }
  func.func @transform_2(%arg0: i32) -> (i32, i32) {
    %c0_i32 = arith.constant 0 : i32
    %c0_i32_0 = arith.constant 0 : i32
    %c0_i32_1 = arith.constant 0 : i32
    return %c0_i32, %c0_i32_0 : i32, i32
  }
  func.func @transform_3(%arg0: i32) -> (i32, i32) {
    %c0_i32 = arith.constant 0 : i32
    %c0_i32_0 = arith.constant 0 : i32
    %c0_i32_1 = arith.constant 0 : i32
    return %c0_i32, %c0_i32_0 : i32, i32
  }
  func.func @transform_4(%arg0: i32) -> (i32, i32) {
    %c0_i32 = arith.constant 0 : i32
    %c0_i32_0 = arith.constant 0 : i32
    %c0_i32_1 = arith.constant 0 : i32
    return %c0_i32, %c0_i32_0 : i32, i32
  }
  func.func @transform_5(%arg0: i32) -> (i32, i32) {
    %c0_i32 = arith.constant 0 : i32
    %c0_i32_0 = arith.constant 0 : i32
    %c0_i32_1 = arith.constant 0 : i32
    return %c0_i32, %c0_i32_0 : i32, i32
  }
  func.func @transform_6(%arg0: i32) -> (i32, i32) {
    %c0_i32 = arith.constant 0 : i32
    %c0_i32_0 = arith.constant 0 : i32
    %c0_i32_1 = arith.constant 0 : i32
    return %c0_i32, %c0_i32_0 : i32, i32
  }
  func.func @transform_7(%arg0: i32) -> (i32, i32) {
    %c0_i32 = arith.constant 0 : i32
    %c0_i32_0 = arith.constant 0 : i32
    %c0_i32_1 = arith.constant 0 : i32
    return %c0_i32, %c0_i32_0 : i32, i32
  }
  func.func @transform_8(%arg0: i32) -> (i32, i32) {
    %c0_i32 = arith.constant 0 : i32
    %c0_i32_0 = arith.constant 0 : i32
    %c0_i32_1 = arith.constant 0 : i32
    return %c0_i32, %c0_i32_0 : i32, i32
  }
}

</mosaic_0001>

<llo_original>
// kernel: tpu_custom_call.1
$region0: #{tpu_custom_call.1}
  #allocation0 [shape = 'u32[]', space=smem, size = 0x4, offset = 0x4, fixed_abs, tag = 'smem constant byte address 0x4 - core index']
  #allocation1 [shape = 'u32[144,128]{1,0:T(1,128)}', space=vmem, size = 0x12000, scoped, tag = 'internal scratch']
  %s0 = inlined_call_operand.vmem [shape: f32[32,3], index: 0, kind: input, shape index: {}]
  %s1 = inlined_call_operand.vmem [shape: f32[32,32], index: 1, kind: input, shape index: {}]
  %s2 = inlined_call_operand.vmem [shape: f32[3,16], index: 2, kind: input, shape index: {}]
  %s3 = inlined_call_operand.vmem [shape: f32[1,16], index: 3, kind: input, shape index: {}]
  %s4 = inlined_call_operand.hbm [shape: f32[16,32], index: 4, kind: input, shape index: {}]
  %s5 = inlined_call_operand.vmem [shape: f32[1,32], index: 5, kind: input, shape index: {}]
  %s6 = inlined_call_operand.hbm [shape: f32[32,32], index: 6, kind: input, shape index: {}]
  %s7 = inlined_call_operand.vmem [shape: f32[1,32], index: 7, kind: input, shape index: {}]
  %s8 = inlined_call_operand.hbm [shape: f32[32,32], index: 8, kind: output, shape index: {}]
  %s9 = sld [smem:[#allocation0]]
  $region50: #{tpu_custom_call.1} parent=0
    _
  %s11 = ssub.s32 1, %s9
  %s12 = scalar_select 0, %s11, %s9
  $region1: #{tpu_custom_call.1} parent=0
    #allocation2 [shape = 'u8[8192]{0}', space=vmem, size = 0x2000, scoped, tag = 'input window, operand 4, single buffered']
    #allocation3 [shape = 's32[1]{0}', space=sflag, size = 0x4, scoped, tag = 'scoped memory for tpu_custom_call.1']
    #allocation4 [shape = 's32[1]{0}', space=sflag, size = 0x4, scoped, tag = 'scoped memory for tpu_custom_call.1']
    #allocation5 [shape = 'u8[16384]{0}', space=vmem, size = 0x4000, scoped, tag = 'input window, operand 6, single buffered']
    #allocation6 [shape = 's32[1]{0}', space=sflag, size = 0x4, scoped, tag = 'scoped memory for tpu_custom_call.1']
    #allocation7 [shape = 'u8[16384]{0}', space=vmem, size = 0x4000, scoped, tag = 'output window, operand 0, single buffered']
    %13 = vsyncpa [#allocation3], 0
    %14 = vsyncpa [#allocation6], 0
    %15 = vsyncpa [#allocation4], 0
    // Predicated region
    $region2: #{tpu_custom_call.1} parent=1 // pred_check
      _
    $region3: #{tpu_custom_call.1} parent=1 // pred_check_branch
      %17 = sbr.rel (0) target = $region5
    $region4: #{tpu_custom_call.1} parent=1 // pred_region
      _
    $region5: #{tpu_custom_call.1} parent=1 // pred_fallthru
      _
    // Predicated region
    $region6: #{tpu_custom_call.1} parent=1 // pred_check
      _
    $region7: #{tpu_custom_call.1} parent=1 // pred_check_branch
      %19 = sbr.rel (0) target = $region9
    $region8: #{tpu_custom_call.1} parent=1 // pred_region
      _
    $region9: #{tpu_custom_call.1} parent=1 // pred_fallthru
      _
    // Predicated region
    $region10: #{tpu_custom_call.1} parent=1 // pred_check
      _
    $region11: #{tpu_custom_call.1} parent=1 // pred_check_branch
      %21 = sbr.rel (0) target = $region13
    $region12: #{tpu_custom_call.1} parent=1 // pred_region
      _
    $region13: #{tpu_custom_call.1} parent=1 // pred_fallthru
      _
    // Predicated region
    $region14: #{tpu_custom_call.1} parent=1 // pred_check
      _
    $region15: #{tpu_custom_call.1} parent=1 // pred_check_branch
      %23 = sbr.rel (0) target = $region17
    $region16: #{tpu_custom_call.1} parent=1 // pred_region
      _
    $region17: #{tpu_custom_call.1} parent=1 // pred_fallthru
      _
    // Predicated region
    $region18: #{tpu_custom_call.1} parent=1 // pred_check
      _
    $region19: #{tpu_custom_call.1} parent=1 // pred_check_branch
      %25 = sbr.rel (0) target = $region21
    $region20: #{tpu_custom_call.1} parent=1 // pred_region
      %s27 = ssub.s32 256, 256
      %28 = vsyncadd [#allocation3], %s27
      %s29 = sshll.u32 [#allocation2], 4
      %s30 = int_to_ptr.vmem [resolvable:$true] %s29
      %35 = dma.hbm_to_vmem [thread:$0]  %s4, 256, %s30, [#allocation3], 128, 128, 8
    $region21: #{tpu_custom_call.1} parent=1 // pred_fallthru
      _
    // Predicated region
    $region22: #{tpu_custom_call.1} parent=1 // pred_check
      _
    $region23: #{tpu_custom_call.1} parent=1 // pred_check_branch
      %37 = sbr.rel (0) target = $region25
    $region24: #{tpu_custom_call.1} parent=1 // pred_region
      _
    $region25: #{tpu_custom_call.1} parent=1 // pred_fallthru
      _
    // Predicated region
    $region26: #{tpu_custom_call.1} parent=1 // pred_check
      _
    $region27: #{tpu_custom_call.1} parent=1 // pred_check_branch
      %39 = sbr.rel (0) target = $region29
    $region28: #{tpu_custom_call.1} parent=1 // pred_region
      %s41 = ssub.s32 512, 512
      %42 = vsyncadd [#allocation6], %s41
      %s43 = sshll.u32 [#allocation5], 4
      %s44 = int_to_ptr.vmem [resolvable:$true] %s43
      %49 = dma.hbm_to_vmem [thread:$0]  %s6, 512, %s44, [#allocation6], 128, 128, 8
    $region29: #{tpu_custom_call.1} parent=1 // pred_fallthru
      _
    // Predicated region
    $region30: #{tpu_custom_call.1} parent=1 // pred_check
      _
    $region31: #{tpu_custom_call.1} parent=1 // pred_check_branch
      %51 = sbr.rel (0) target = $region33
    $region32: #{tpu_custom_call.1} parent=1 // pred_region
      _
    $region33: #{tpu_custom_call.1} parent=1 // pred_fallthru
      _
    // Predicated region
    $region34: #{tpu_custom_call.1} parent=1 // pred_check
      _
    $region35: #{tpu_custom_call.1} parent=1 // pred_check_branch
      %53 = sbr.rel (0) target = $region37
    $region36: #{tpu_custom_call.1} parent=1 // pred_region
      %54 = dma.done [#allocation3], 256
    $region37: #{tpu_custom_call.1} parent=1 // pred_fallthru
      _
    // Predicated region
    $region38: #{tpu_custom_call.1} parent=1 // pred_check
      _
    $region39: #{tpu_custom_call.1} parent=1 // pred_check_branch
      %56 = sbr.rel (0) target = $region41
    $region40: #{tpu_custom_call.1} parent=1 // pred_region
      %57 = dma.done [#allocation6], 512
    $region41: #{tpu_custom_call.1} parent=1 // pred_fallthru
      _
    %v58 = vld [vmem:[%s0] sm:$0xff]
    %v59 = vld [vmem:[%s0 + $0x8] sm:$0xff]
    %v60 = vld [vmem:[%s0 + $0x10] sm:$0xff]
    %v61 = vld [vmem:[%s0 + $0x18] sm:$0xff]
    %v62 = vld [vmem:[%s2] sm:$0x7]
    %v63 = vld [vmem:[%s3] sm:$0x1]
    %v65 = vlaneseq
    %v66 = vshrl.u32 %v65, 7
    %v67 = vsub.s32 0, %v66
    %v68 = vrot.slane %v63, %v67
    %vm70 = vcmask 23552
    %v72 = vsel %vm70, %v58, 0
    %v75 = vsel %vm70, %v59, 0
    %v78 = vsel %vm70, %v60, 0
    %v81 = vsel %vm70, %v61, 0
    %vm83 = vcmask 1042432
    %v85 = vsel %vm83, %v62, 0
    %87 = vmatprep.subr.mxu0 0.0
    %88 = vmatpush1.msra.mxu0 0.0
    %89 = vmatprep.subr.mxu0 0.0
    %90 = vmatpush1.msra.mxu0 0.0
    %91 = vmatprep.subr.mxu0 0.0
    %92 = vmatpush1.msra.mxu0 0.0
    %93 = vmatprep.subr.mxu0 0.0
    %94 = vmatpush1.msra.mxu0 0.0
    %95 = vmatprep.subr.mxu0 0.0
    %96 = vmatpush1.msra.mxu0 0.0
    %97 = vmatprep.subr.mxu0 0.0
    %98 = vmatpush1.msra.mxu0 0.0
    %99 = vmatprep.subr.mxu0 0.0
    %100 = vmatpush1.msra.mxu0 0.0
    %101 = vmatprep.subr.mxu0 0.0
    %102 = vmatpush1.msra.mxu0 0.0
    %103 = vmatprep.subr.mxu0 0.0
    %104 = vmatpush1.msra.mxu0 0.0
    %105 = vmatprep.subr.mxu0 0.0
    %106 = vmatpush1.msra.mxu0 0.0
    %107 = vmatprep.subr.mxu0 0.0
    %108 = vmatpush1.msra.mxu0 0.0
    %109 = vmatprep.subr.mxu0 0.0
    %110 = vmatpush1.msra.mxu0 0.0
    %111 = vmatprep.subr.mxu0 0.0
    %112 = vmatpush1.msra.mxu0 0.0
    %113 = vmatprep.subr.mxu0 0.0
    %114 = vmatpush1.msra.mxu0 0.0
    %115 = vmatprep.subr.mxu0 0.0
    %116 = vmatpush1.msra.mxu0 0.0
    %117 = vmatprep.subr.mxu0 0.0
    %118 = vmatpush1.msra.mxu0 %v85
    %119 = vmatprep.subr.mxu0 0.0
    %120 = vmatpush2.msra.mxu0 0.0
    %121 = vmatprep.subr.mxu0 0.0
    %122 = vmatpush2.msra.mxu0 0.0
    %123 = vmatprep.subr.mxu0 0.0
    %124 = vmatpush2.msra.mxu0 0.0
    %125 = vmatprep.subr.mxu0 0.0
    %126 = vmatpush2.msra.mxu0 0.0
    %127 = vmatprep.subr.mxu0 0.0
    %128 = vmatpush2.msra.mxu0 0.0
    %129 = vmatprep.subr.mxu0 0.0
    %130 = vmatpush2.msra.mxu0 0.0
    %131 = vmatprep.subr.mxu0 0.0
    %132 = vmatpush2.msra.mxu0 0.0
    %133 = vmatprep.subr.mxu0 0.0
    %134 = vmatpush2.msra.mxu0 0.0
    %135 = vmatprep.subr.mxu0 0.0
    %136 = vmatpush2.msra.mxu0 0.0
    %137 = vmatprep.subr.mxu0 0.0
    %138 = vmatpush2.msra.mxu0 0.0
    %139 = vmatprep.subr.mxu0 0.0
    %140 = vmatpush2.msra.mxu0 0.0
    %141 = vmatprep.subr.mxu0 0.0
    %142 = vmatpush2.msra.mxu0 0.0
    %143 = vmatprep.subr.mxu0 0.0
    %144 = vmatpush2.msra.mxu0 0.0
    %145 = vmatprep.subr.mxu0 0.0
    %146 = vmatpush2.msra.mxu0 0.0
    %147 = vmatprep.subr.mxu0 0.0
    %148 = vmatpush2.msra.mxu0 0.0
    %149 = vmatprep.subr.mxu0 0.0
    %150 = vmatpush2.msra.mxu0 0.0
    %151 = vmatprep.mubr.f32.mxu0 0.0
    %152 = vmatmul.mubr.f32.gmra.mxu0 %v72
    %v153 = vpop.f32.mrf.mxu0
    %v154 = vadd.f32 %v68, %v153
    %v155 = vpop.f32.mrf.mxu0
    %156 = vmatprep.mubr.f32.mxu0 0.0
    %157 = vmatmul.mubr.f32.gmra.mxu0 %v75
    %v158 = vpop.f32.mrf.mxu0
    %v159 = vadd.f32 %v68, %v158
    %v160 = vpop.f32.mrf.mxu0
    %161 = vmatprep.mubr.f32.mxu0 0.0
    %162 = vmatmul.mubr.f32.gmra.mxu0 %v78
    %v163 = vpop.f32.mrf.mxu0
    %v164 = vadd.f32 %v68, %v163
    %v165 = vpop.f32.mrf.mxu0
    %166 = vmatprep.mubr.f32.mxu0 0.0
    %167 = vmatmul.mubr.f32.gmra.mxu0 %v81
    %v168 = vpop.f32.mrf.mxu0
    %v169 = vadd.f32 %v68, %v168
    %v170 = vpop.f32.mrf.mxu0
    %171 = vdwg.mxu0
    %vm172 = vcmask 130048
    %v173 = vsel %vm172, %v154, 0.0
    %v174 = vsel %vm172, %v159, 0.0
    %v175 = vadd.f32 %v173, %v174
    %v176 = vsel %vm172, %v164, 0.0
    %v177 = vadd.f32 %v175, %v176
    %v178 = vsel %vm172, %v169, 0.0
    %v179 = vadd.f32 %v177, %v178
    %v180 = vrot.slane %v179, 4
    %v181 = vadd.f32 %v179, %v180
    %v182 = vrot.slane %v181, 2
    %v183 = vadd.f32 %v181, %v182
    %v184 = vrot.slane %v183, 1
    %v185 = vadd.f32 %v183, %v184
    %v186 = vrcp.pop 32.0
    %v187 = vmul.f32 %v185, %v186
    %v188 = vsub.f32 %v154, %v187
    %v189 = vsub.f32 %v159, %v187
    %v190 = vsub.f32 %v164, %v187
    %v191 = vsub.f32 %v169, %v187
    %v192 = vmul.f32 %v188, %v188
    %v193 = vmul.f32 %v189, %v189
    %v194 = vmul.f32 %v190, %v190
    %v195 = vmul.f32 %v191, %v191
    %v196 = vsel %vm172, %v192, 0.0
    %v197 = vsel %vm172, %v193, 0.0
    %v198 = vadd.f32 %v196, %v197
    %v199 = vsel %vm172, %v194, 0.0
    %v200 = vadd.f32 %v198, %v199
    %v201 = vsel %vm172, %v195, 0.0
    %v202 = vadd.f32 %v200, %v201
    %v203 = vrot.slane %v202, 4
    %v204 = vadd.f32 %v202, %v203
    %v205 = vrot.slane %v204, 2
    %v206 = vadd.f32 %v204, %v205
    %v207 = vrot.slane %v206, 1
    %v208 = vadd.f32 %v206, %v207
    %v209 = vmul.f32 %v208, %v186
    %v210 = vadd.f32 %v209, 1e-05
    %v211 = vrsqrt.pop %v210
    %v212 = vmul.f32 %v188, %v211
    %v213 = vmul.f32 %v189, %v211
    %v214 = vmul.f32 %v190, %v211
    %v215 = vmul.f32 %v191, %v211
    %v216 = vmax.f32 %v212, 0.0
    %v217 = vmax.f32 %v213, 0.0
    %v218 = vmax.f32 %v214, 0.0
    %v219 = vmax.f32 %v215, 0.0
    %v220 = vld [vmem:[#allocation2] sm:$0xff]
    %v221 = vld [vmem:[#allocation2 + $0x8] sm:$0xff]
    %v222 = vld [vmem:[%s5] sm:$0x1]
    %v224 = vlaneseq
    %v225 = vshrl.u32 %v224, 7
    %v226 = vsub.s32 0, %v225
    %v227 = vrot.slane %v222, %v226
    %v230 = vsel %vm172, %v216, 0
    %v233 = vsel %vm172, %v217, 0
    %v236 = vsel %vm172, %v218, 0
    %v239 = vsel %vm172, %v219, 0
    %241 = vmatprep.subr.mxu0 0.0
    %242 = vmatpush1.msra.mxu0 0.0
    %243 = vmatprep.subr.mxu0 0.0
    %244 = vmatpush1.msra.mxu0 0.0
    %245 = vmatprep.subr.mxu0 0.0
    %246 = vmatpush1.msra.mxu0 0.0
    %247 = vmatprep.subr.mxu0 0.0
    %248 = vmatpush1.msra.mxu0 0.0
    %249 = vmatprep.subr.mxu0 0.0
    %250 = vmatpush1.msra.mxu0 0.0
    %251 = vmatprep.subr.mxu0 0.0
    %252 = vmatpush1.msra.mxu0 0.0
    %253 = vmatprep.subr.mxu0 0.0
    %254 = vmatpush1.msra.mxu0 0.0
    %255 = vmatprep.subr.mxu0 0.0
    %256 = vmatpush1.msra.mxu0 0.0
    %257 = vmatprep.subr.mxu0 0.0
    %258 = vmatpush1.msra.mxu0 0.0
    %259 = vmatprep.subr.mxu0 0.0
    %260 = vmatpush1.msra.mxu0 0.0
    %261 = vmatprep.subr.mxu0 0.0
    %262 = vmatpush1.msra.mxu0 0.0
    %263 = vmatprep.subr.mxu0 0.0
    %264 = vmatpush1.msra.mxu0 0.0
    %265 = vmatprep.subr.mxu0 0.0
    %266 = vmatpush1.msra.mxu0 0.0
    %267 = vmatprep.subr.mxu0 0.0
    %268 = vmatpush1.msra.mxu0 0.0
    %269 = vmatprep.subr.mxu0 0.0
    %270 = vmatpush1.msra.mxu0 %v221
    %271 = vmatprep.subr.mxu0 0.0
    %272 = vmatpush1.msra.mxu0 %v220
    %273 = vmatprep.subr.mxu0 0.0
    %274 = vmatpush2.msra.mxu0 0.0
    %275 = vmatprep.subr.mxu0 0.0
    %276 = vmatpush2.msra.mxu0 0.0
    %277 = vmatprep.subr.mxu0 0.0
    %278 = vmatpush2.msra.mxu0 0.0
    %279 = vmatprep.subr.mxu0 0.0
    %280 = vmatpush2.msra.mxu0 0.0
    %281 = vmatprep.subr.mxu0 0.0
    %282 = vmatpush2.msra.mxu0 0.0
    %283 = vmatprep.subr.mxu0 0.0
    %284 = vmatpush2.msra.mxu0 0.0
    %285 = vmatprep.subr.mxu0 0.0
    %286 = vmatpush2.msra.mxu0 0.0
    %287 = vmatprep.subr.mxu0 0.0
    %288 = vmatpush2.msra.mxu0 0.0
    %289 = vmatprep.subr.mxu0 0.0
    %290 = vmatpush2.msra.mxu0 0.0
    %291 = vmatprep.subr.mxu0 0.0
    %292 = vmatpush2.msra.mxu0 0.0
    %293 = vmatprep.subr.mxu0 0.0
    %294 = vmatpush2.msra.mxu0 0.0
    %295 = vmatprep.subr.mxu0 0.0
    %296 = vmatpush2.msra.mxu0 0.0
    %297 = vmatprep.subr.mxu0 0.0
    %298 = vmatpush2.msra.mxu0 0.0
    %299 = vmatprep.subr.mxu0 0.0
    %300 = vmatpush2.msra.mxu0 0.0
    %301 = vmatprep.subr.mxu0 0.0
    %302 = vmatpush2.msra.mxu0 0.0
    %303 = vmatprep.subr.mxu0 0.0
    %304 = vmatpush2.msra.mxu0 0.0
    %305 = vmatprep.mubr.f32.mxu0 0.0
    %306 = vmatmul.mubr.f32.gmra.mxu0 %v230
    %v307 = vpop.f32.mrf.mxu0
    %v308 = vadd.f32 %v227, %v307
    %v309 = vpop.f32.mrf.mxu0
    %310 = vmatprep.mubr.f32.mxu0 0.0
    %311 = vmatmul.mubr.f32.gmra.mxu0 %v233
    %v312 = vpop.f32.mrf.mxu0
    %v313 = vadd.f32 %v227, %v312
    %v314 = vpop.f32.mrf.mxu0
    %315 = vmatprep.mubr.f32.mxu0 0.0
    %316 = vmatmul.mubr.f32.gmra.mxu0 %v236
    %v317 = vpop.f32.mrf.mxu0
    %v318 = vadd.f32 %v227, %v317
    %v319 = vpop.f32.mrf.mxu0
    %320 = vmatprep.mubr.f32.mxu0 0.0
    %321 = vmatmul.mubr.f32.gmra.mxu0 %v239
    %v322 = vpop.f32.mrf.mxu0
    %v323 = vadd.f32 %v227, %v322
    %v324 = vpop.f32.mrf.mxu0
    %325 = vdwg.mxu0
    %vm326 = vcmask 261120
    %v327 = vsel %vm326, %v308, 0.0
    %v328 = vsel %vm326, %v313, 0.0
    %v329 = vadd.f32 %v327, %v328
    %v330 = vsel %vm326, %v318, 0.0
    %v331 = vadd.f32 %v329, %v330
    %v332 = vsel %vm326, %v323, 0.0
    %v333 = vadd.f32 %v331, %v332
    %v334 = vrot.slane %v333, 4
    %v335 = vadd.f32 %v333, %v334
    %v336 = vrot.slane %v335, 2
    %v337 = vadd.f32 %v335, %v336
    %v338 = vrot.slane %v337, 1
    %v339 = vadd.f32 %v337, %v338
    %v340 = vmul.f32 %v339, %v186
    %v341 = vsub.f32 %v308, %v340
    %v342 = vsub.f32 %v313, %v340
    %v343 = vsub.f32 %v318, %v340
    %v344 = vsub.f32 %v323, %v340
    %v345 = vmul.f32 %v341, %v341
    %v346 = vmul.f32 %v342, %v342
    %v347 = vmul.f32 %v343, %v343
    %v348 = vmul.f32 %v344, %v344
    %v349 = vsel %vm326, %v345, 0.0
    %v350 = vsel %vm326, %v346, 0.0
    %v351 = vadd.f32 %v349, %v350
    %v352 = vsel %vm326, %v347, 0.0
    %v353 = vadd.f32 %v351, %v352
    %v354 = vsel %vm326, %v348, 0.0
    %v355 = vadd.f32 %v353, %v354
    %v356 = vrot.slane %v355, 4
    %v357 = vadd.f32 %v355, %v356
    %v358 = vrot.slane %v357, 2
    %v359 = vadd.f32 %v357, %v358
    %v360 = vrot.slane %v359, 1
    %v361 = vadd.f32 %v359, %v360
    %v362 = vmul.f32 %v361, %v186
    %v363 = vadd.f32 %v362, 1e-05
    %v364 = vrsqrt.pop %v363
    %v365 = vmul.f32 %v341, %v364
    %v366 = vmul.f32 %v342, %v364
    %v367 = vmul.f32 %v343, %v364
    %v368 = vmul.f32 %v344, %v364
    %v369 = vmax.f32 %v365, 0.0
    %v370 = vmax.f32 %v366, 0.0
    %v371 = vmax.f32 %v367, 0.0
    %v372 = vmax.f32 %v368, 0.0
    %v373 = vld [vmem:[#allocation5] sm:$0xff]
    %v374 = vld [vmem:[#allocation5 + $0x8] sm:$0xff]
    %v375 = vld [vmem:[#allocation5 + $0x10] sm:$0xff]
    %v376 = vld [vmem:[#allocation5 + $0x18] sm:$0xff]
    %v377 = vld [vmem:[%s7] sm:$0x1]
    %v379 = vlaneseq
    %v380 = vshrl.u32 %v379, 7
    %v381 = vsub.s32 0, %v380
    %v382 = vrot.slane %v377, %v381
    %v385 = vsel %vm326, %v369, 0
    %v388 = vsel %vm326, %v370, 0
    %v391 = vsel %vm326, %v371, 0
    %v394 = vsel %vm326, %v372, 0
    %396 = vmatprep.subr.mxu0 0.0
    %397 = vmatpush1.msra.mxu0 0.0
    %398 = vmatprep.subr.mxu0 0.0
    %399 = vmatpush1.msra.mxu0 0.0
    %400 = vmatprep.subr.mxu0 0.0
    %401 = vmatpush1.msra.mxu0 0.0
    %402 = vmatprep.subr.mxu0 0.0
    %403 = vmatpush1.msra.mxu0 0.0
    %404 = vmatprep.subr.mxu0 0.0
    %405 = vmatpush1.msra.mxu0 0.0
    %406 = vmatprep.subr.mxu0 0.0
    %407 = vmatpush1.msra.mxu0 0.0
    %408 = vmatprep.subr.mxu0 0.0
    %409 = vmatpush1.msra.mxu0 0.0
    %410 = vmatprep.subr.mxu0 0.0
    %411 = vmatpush1.msra.mxu0 0.0
    %412 = vmatprep.subr.mxu0 0.0
    %413 = vmatpush1.msra.mxu0 0.0
    %414 = vmatprep.subr.mxu0 0.0
    %415 = vmatpush1.msra.mxu0 0.0
    %416 = vmatprep.subr.mxu0 0.0
    %417 = vmatpush1.msra.mxu0 0.0
    %418 = vmatprep.subr.mxu0 0.0
    %419 = vmatpush1.msra.mxu0 0.0
    %420 = vmatprep.subr.mxu0 0.0
    %421 = vmatpush1.msra.mxu0 %v376
    %422 = vmatprep.subr.mxu0 0.0
    %423 = vmatpush1.msra.mxu0 %v375
    %424 = vmatprep.subr.mxu0 0.0
    %425 = vmatpush1.msra.mxu0 %v374
    %426 = vmatprep.subr.mxu0 0.0
    %427 = vmatpush1.msra.mxu0 %v373
    %428 = vmatprep.subr.mxu0 0.0
    %429 = vmatpush2.msra.mxu0 0.0
    %430 = vmatprep.subr.mxu0 0.0
    %431 = vmatpush2.msra.mxu0 0.0
    %432 = vmatprep.subr.mxu0 0.0
    %433 = vmatpush2.msra.mxu0 0.0
    %434 = vmatprep.subr.mxu0 0.0
    %435 = vmatpush2.msra.mxu0 0.0
    %436 = vmatprep.subr.mxu0 0.0
    %437 = vmatpush2.msra.mxu0 0.0
    %438 = vmatprep.subr.mxu0 0.0
    %439 = vmatpush2.msra.mxu0 0.0
    %440 = vmatprep.subr.mxu0 0.0
    %441 = vmatpush2.msra.mxu0 0.0
    %442 = vmatprep.subr.mxu0 0.0
    %443 = vmatpush2.msra.mxu0 0.0
    %444 = vmatprep.subr.mxu0 0.0
    %445 = vmatpush2.msra.mxu0 0.0
    %446 = vmatprep.subr.mxu0 0.0
    %447 = vmatpush2.msra.mxu0 0.0
    %448 = vmatprep.subr.mxu0 0.0
    %449 = vmatpush2.msra.mxu0 0.0
    %450 = vmatprep.subr.mxu0 0.0
    %451 = vmatpush2.msra.mxu0 0.0
    %452 = vmatprep.subr.mxu0 0.0
    %453 = vmatpush2.msra.mxu0 0.0
    %454 = vmatprep.subr.mxu0 0.0
    %455 = vmatpush2.msra.mxu0 0.0
    %456 = vmatprep.subr.mxu0 0.0
    %457 = vmatpush2.msra.mxu0 0.0
    %458 = vmatprep.subr.mxu0 0.0
    %459 = vmatpush2.msra.mxu0 0.0
    %460 = vmatprep.mubr.f32.mxu0 0.0
    %461 = vmatmul.mubr.f32.gmra.mxu0 %v385
    %v462 = vpop.f32.mrf.mxu0
    %v463 = vadd.f32 %v382, %v462
    %v464 = vpop.f32.mrf.mxu0
    %465 = vmatprep.mubr.f32.mxu0 0.0
    %466 = vmatmul.mubr.f32.gmra.mxu0 %v388
    %v467 = vpop.f32.mrf.mxu0
    %v468 = vadd.f32 %v382, %v467
    %v469 = vpop.f32.mrf.mxu0
    %470 = vmatprep.mubr.f32.mxu0 0.0
    %471 = vmatmul.mubr.f32.gmra.mxu0 %v391
    %v472 = vpop.f32.mrf.mxu0
    %v473 = vadd.f32 %v382, %v472
    %v474 = vpop.f32.mrf.mxu0
    %475 = vmatprep.mubr.f32.mxu0 0.0
    %476 = vmatmul.mubr.f32.gmra.mxu0 %v394
    %v477 = vpop.f32.mrf.mxu0
    %v478 = vadd.f32 %v382, %v477
    %v479 = vpop.f32.mrf.mxu0
    %480 = vdwg.mxu0
    %v481 = vld [vmem:[%s1] sm:$0xff]
    %v482 = vld [vmem:[%s1 + $0x8] sm:$0xff]
    %v483 = vld [vmem:[%s1 + $0x10] sm:$0xff]
    %v484 = vld [vmem:[%s1 + $0x18] sm:$0xff]
    %v485 = vadd.f32 %v463, %v481
    %v486 = vadd.f32 %v468, %v482
    %v487 = vadd.f32 %v473, %v483
    %v488 = vadd.f32 %v478, %v484
    %489 = vst.msk [vmem:[#allocation7] sm:$0xff] %vm326, %v485
    %490 = vst.msk [vmem:[#allocation7 + $0x8] sm:$0xff] %vm326, %v486
    %491 = vst.msk [vmem:[#allocation7 + $0x10] sm:$0xff] %vm326, %v487
    %492 = vst.msk [vmem:[#allocation7 + $0x18] sm:$0xff] %vm326, %v488
    // Predicated region
    $region42: #{tpu_custom_call.1} parent=1 // pred_check
      _
    $region43: #{tpu_custom_call.1} parent=1 // pred_check_branch
      %494 = sbr.rel (0) target = $region45
    $region44: #{tpu_custom_call.1} parent=1 // pred_region
      %s496 = ssub.s32 512, 512
      %497 = vsyncadd [#allocation4], %s496
      %s498 = sshll.u32 [#allocation7], 4
      %s499 = int_to_ptr.vmem [resolvable:$true] %s498
      %504 = dma.vmem_to_hbm [thread:$0]  %s499, 512, %s8, [#allocation4], 128, 128, 8
    $region45: #{tpu_custom_call.1} parent=1 // pred_fallthru
      _
    // Predicated region
    $region46: #{tpu_custom_call.1} parent=1 // pred_check
      _
    $region47: #{tpu_custom_call.1} parent=1 // pred_check_branch
      %506 = sbr.rel (0) target = $region49
    $region48: #{tpu_custom_call.1} parent=1 // pred_region
      %507 = dma.done [#allocation4], 512
    $region49: #{tpu_custom_call.1} parent=1 // pred_fallthru
      _
    %508 = vsyncpa [#allocation3], 1
    %509 = vsyncpa [#allocation6], 1
    %510 = vsyncpa [#allocation4], 1

</llo_original>
